<compile_context>
chip_gen: v7x
topology: tpu7x:2x2x1
jax: 0.10.0
libtpu: 0.0.40
codegen_flags: <defaults>
</compile_context>

<pallas_src>
import jax
import jax.numpy as jnp
from jax import lax
from jax.experimental import pallas as pl
from jax.experimental.pallas import tpu as pltpu


def _mlp_kernel(x_ref, w1_ref, b1_ref, w2_ref, b2_ref, w3_ref, b3_ref,
                w4t_ref, b4_ref, o_ref):
    """One batch tile of the fused MLP.

    x_ref:   (TILE_B, 243)            streamed per grid step
    w1_ref:  (243, 128)  b1_ref: (1, 128)   resident; zero-padded 112 -> 128
    w2_ref:  (128, 128)  b2_ref: (1, 128)   zero-padded 60 -> 128
    w3_ref:  (128, 128)  b3_ref: (1, 128)   zero-padded 30 -> 128
    w4t_ref: (8, 128)    row 0 holds w4^T, rows 1..7 are zero padding
    b4_ref:  (1,)        scalar bias in SMEM
    o_ref:   (1, 1, TILE_B)           lane-dense output slab for this tile
    """
    cd = w1_ref.dtype                      # MXU input dtype (f32 by default)
    x = x_ref[...].astype(cd)              # in-kernel cast: no extra HBM pass

    h = jnp.dot(x, w1_ref[...], preferred_element_type=jnp.float32)
    h = jnp.maximum(h + b1_ref[...], 0.0)

    h = jnp.dot(h.astype(cd), w2_ref[...], preferred_element_type=jnp.float32)
    h = jnp.maximum(h + b2_ref[...], 0.0)

    h = jnp.dot(h.astype(cd), w3_ref[...], preferred_element_type=jnp.float32)
    h = jnp.maximum(h + b3_ref[...], 0.0)

    # Final layer: contract the feature axis of h against w4^T so the result
    # lands with batch on the lane axis (unmasked, lane-dense stores).  Only
    # row 0 of the (8, TILE_B) result is real; rows 1..7 are zero padding.
    out8 = lax.dot_general(
        w4t_ref[...], h.astype(cd),
        dimension_numbers=(((1,), (1,)), ((), ())),
        preferred_element_type=jnp.float32)             # (8, TILE_B)
    o_ref[...] = (out8[0:1, :] + b4_ref[0])[None]       # (1, 1, TILE_B)


def _round_up(n, m):
    return ((n + m - 1) // m) * m


def _pad_to(a, shape):
    pads = [(0, t - s) for s, t in zip(a.shape, shape)]
    return jnp.pad(a, pads) if any(p[1] for p in pads) else a


def mlp_forward(x, params, *, tile_b=8192, matmul_dtype=jnp.float32):
    """Pallas forward pass equivalent to Net.forward.

    tile_b:        requested batch-tile size.  Rounded to a multiple of 128,
                   clamped to the per-generation VMEM budget, and capped so
                   the grid has >= 2 steps when B allows (v7x megacore).
                   Sweep 2048..8192+ for large batches.
    matmul_dtype:  bf16 optionally halves in-kernel MXU input width (f32
                   accumulation kept).  HBM traffic only drops if x itself is
                   already stored bf16 upstream; the cast happens inside the
                   kernel so no extra HBM pass is ever added.
                   Note: keep f32 on v5e (no bf16 VPU, no HBM win).
    """
    w1, b1, w2, b2, w3, b3, w4, b4 = params
    B, F = x.shape
    assert F == 243, F
    H = 128  # lane-padded hidden width (112 / 60 / 30 -> 128)

    # One-time zero padding of the tiny resident weights (exact numerics).
    w1p = _pad_to(w1, (F, H))
    w2p = _pad_to(w2, (H, H))
    w3p = _pad_to(w3, (H, H))
    w4t = _pad_to(w4.T, (8, H))                              # (1,30) -> (8,128)
    b1p = _pad_to(b1.reshape(1, -1).astype(jnp.float32), (1, H))
    b2p = _pad_to(b2.reshape(1, -1).astype(jnp.float32), (1, H))
    b3p = _pad_to(b3.reshape(1, -1).astype(jnp.float32), (1, H))
    b4p = b4.reshape(1).astype(jnp.float32)                  # scalar, SMEM

    if matmul_dtype != jnp.float32:
        # Weights are tiny -> cast once here.  x is cast INSIDE the kernel so
        # we never add a wrapper-side full-HBM read+write of the input.
        w1p, w2p, w3p, w4t = (a.astype(matmul_dtype)
                              for a in (w1p, w2p, w3p, w4t))

    # ---- per-generation sizing -------------------------------------------
    try:
        phys_vmem = int(pltpu.get_tpu_info().vmem_capacity_bytes)
    except Exception:
        phys_vmem = 64 * 1024 * 1024          # conservative: v7x per-TC VMEM
    vmem_limit = int(min(phys_vmem - (8 << 20), 112 << 20))  # 56 MiB on v7x,
    vmem_limit = max(vmem_limit, 32 << 20)                    # ~112 MiB v5e/v6e

    # Batch tile: as big as the VMEM budget allows (amortizes per-step
    # overhead / lengthens DMA bursts), capped so >= 2 grid steps when B is
    # big enough so both v7x TensorCores get work on the "parallel" axis.
    per_row = 2 * F * x.dtype.itemsize + 3 * H * 4 + 8   # x dbuf + f32 interms
    max_tile = max(128, ((vmem_limit // 2) // per_row) // 128 * 128)
    tile_b = max(128, (int(tile_b) // 128) * 128)
    tile_b = min(tile_b, max_tile)
    tile_b = max(128, min(tile_b, _round_up(pl.cdiv(B, 2), 128)))
    num_tiles = pl.cdiv(B, tile_b)   # ragged last tile: no jnp.pad pass over x

    const = lambda i: (0, 0)         # resident blocks: never re-DMA'd

    grid_spec = pltpu.PrefetchScalarGridSpec(
        num_scalar_prefetch=0,
        grid=(num_tiles,),
        in_specs=[
            pl.BlockSpec((tile_b, F), lambda i: (i, 0)),        # x: streamed
            pl.BlockSpec((F, H), const),                        # w1
            pl.BlockSpec((1, H), const),                        # b1
            pl.BlockSpec((H, H), const),                        # w2
            pl.BlockSpec((1, H), const),                        # b2
            pl.BlockSpec((H, H), const),                        # w3
            pl.BlockSpec((1, H), const),                        # b3
            pl.BlockSpec((8, H), const),                        # w4^T (padded)
            pl.BlockSpec(memory_space=pltpu.MemorySpace.SMEM),  # b4 scalar
        ],
        out_specs=pl.BlockSpec((1, 1, tile_b), lambda i: (i, 0, 0)),
    )

    out = pl.pallas_call(
        _mlp_kernel,
        out_shape=jax.ShapeDtypeStruct((num_tiles, 1, tile_b), jnp.float32),
        grid_spec=grid_spec,
        compiler_params=pltpu.CompilerParams(
            # TODO(synk): confirm on a v7x profile that the batch axis is
            # actually split across both TensorCores; if not, switch this axis
            # to pltpu.CORE_PARALLEL.
            dimension_semantics=("parallel",),
            vmem_limit_bytes=vmem_limit),
    )(x, w1p, b1p, w2p, b2p, w3p, b3p, w4t, b4p)

    # (num_tiles, 1, tile_b) lane-dense slab -> (B, 1); rows >= B (from the
    # ragged last tile reading past the end of x) are discarded here.
    return out.reshape(num_tiles * tile_b, 1)[:B]


def init_params(key, std=0.01):
    """Deterministic init mirroring the PyTorch module (truncnorm, zero bias)."""
    k1, k2, k3, k4 = jax.random.split(key, 4)

    def tn(k, shape):
        return std * jax.random.truncated_normal(k, -2.0, 2.0, shape, jnp.float32)

    w1 = tn(k1, (243, 112))
    w2 = tn(k2, (112, 60))
    w3 = tn(k3, (60, 30))
    w4 = tn(k4, (30, 1))
    b1 = jnp.zeros((112,), jnp.float32)
    b2 = jnp.zeros((60,), jnp.float32)
    b3 = jnp.zeros((30,), jnp.float32)
    b4 = jnp.zeros((1,), jnp.float32)
    return (w1, b1, w2, b2, w3, b3, w4, b4)


def mlp_reference(x, params):
    """Pure-JAX reference of Net.forward for correctness checking."""
    w1, b1, w2, b2, w3, b3, w4, b4 = params
    h = jnp.maximum(x @ w1 + b1, 0.0)
    h = jnp.maximum(h @ w2 + b2, 0.0)
    h = jnp.maximum(h @ w3 + b3, 0.0)
    return h @ w4 + b4


if __name__ == "__main__":
    key = jax.random.PRNGKey(0)
    kx1, kx2, kp = jax.random.split(key, 3)

    # std=0.5 (instead of the module's 0.01) makes outputs O(1) so the
    # tolerance check below is numerically meaningful; the kernel is
    # value-agnostic so this does not change the semantics being tested.
    params = init_params(kp, std=0.5)

    # 1) tiny aligned batch
    x_small = jax.random.normal(kx1, (8, 243), jnp.float32)
    out_small = jax.block_until_ready(mlp_forward(x_small, params))
    ref_small = mlp_reference(x_small, params)
    assert out_small.shape == (8, 1), out_small.shape
    assert float(jnp.max(jnp.abs(out_small))) > 0.0, "kernel produced all zeros"
    assert jnp.allclose(out_small, ref_small, atol=1e-4, rtol=1e-4), "mismatch (small)"

    # 2) ragged multi-tile batch: exercises grid=cdiv(B, tile_b) with a
    #    partial last tile and no wrapper-side jnp.pad of x.
    x_rag = jax.random.normal(kx2, (300, 243), jnp.float32)
    out_rag = jax.block_until_ready(mlp_forward(x_rag, params, tile_b=256))
    ref_rag = mlp_reference(x_rag, params)
    assert out_rag.shape == (300, 1), out_rag.shape
    assert float(jnp.max(jnp.abs(out_rag))) > 0.0, "kernel produced all zeros"
    assert jnp.allclose(out_rag, ref_rag, atol=1e-4, rtol=1e-4), "mismatch (ragged)"

    print("KERNEL_OK")
</pallas_src>

<mosaic_0001>
module attributes {stable_mosaic.version = 11 : i64} {
  func.func @_mlp_kernel(%arg0: i32, %arg1: memref<128x243xf32, #tpu.memory_space<vmem>>, %arg2: memref<243x128xf32, #tpu.memory_space<vmem>>, %arg3: memref<1x128xf32, #tpu.memory_space<vmem>>, %arg4: memref<128x128xf32, #tpu.memory_space<vmem>>, %arg5: memref<1x128xf32, #tpu.memory_space<vmem>>, %arg6: memref<128x128xf32, #tpu.memory_space<vmem>>, %arg7: memref<1x128xf32, #tpu.memory_space<vmem>>, %arg8: memref<8x128xf32, #tpu.memory_space<vmem>>, %arg9: memref<1xf32, #tpu.memory_space<smem>>, %arg10: memref<1x1x128xf32, #tpu.memory_space<vmem>>) attributes {dimension_semantics = [#tpu.dimension_semantics<parallel>], iteration_bounds = array<i64: 1>, scalar_prefetch = 0 : i64, scratch_operands = 0 : i64, tpu.core_type = #tpu.core_type<tc>, window_params = [{transform_indices = @transform_0, window_bounds = array<i64: 128, 243>}, {pipeline_mode = #tpu.pipeline_mode<synchronous>, transform_indices = @transform_1, window_bounds = array<i64: 243, 128>}, {pipeline_mode = #tpu.pipeline_mode<synchronous>, transform_indices = @transform_2, window_bounds = array<i64: 1, 128>}, {pipeline_mode = #tpu.pipeline_mode<synchronous>, transform_indices = @transform_3, window_bounds = array<i64: 128, 128>}, {pipeline_mode = #tpu.pipeline_mode<synchronous>, transform_indices = @transform_4, window_bounds = array<i64: 1, 128>}, {pipeline_mode = #tpu.pipeline_mode<synchronous>, transform_indices = @transform_5, window_bounds = array<i64: 128, 128>}, {pipeline_mode = #tpu.pipeline_mode<synchronous>, transform_indices = @transform_6, window_bounds = array<i64: 1, 128>}, {pipeline_mode = #tpu.pipeline_mode<synchronous>, transform_indices = @transform_7, window_bounds = array<i64: 8, 128>}, {transform_indices = @transform_8, window_bounds = array<i64: 1>}, {transform_indices = @transform_9, window_bounds = array<i64: 1, 1, 128>}]} {
    %c0 = arith.constant 0 : index
    %c0_0 = arith.constant 0 : index
    %0 = vector.load %arg1[%c0, %c0_0] : memref<128x243xf32, #tpu.memory_space<vmem>>, vector<128x243xf32>
    %c0_1 = arith.constant 0 : index
    %c0_2 = arith.constant 0 : index
    %1 = vector.load %arg2[%c0_1, %c0_2] : memref<243x128xf32, #tpu.memory_space<vmem>>, vector<243x128xf32>
    %cst = arith.constant dense<0.000000e+00> : vector<128x128xf32>
    %2 = tpu.matmul %0, %1, %cst {dimension_numbers = #tpu.dot_dimension_numbers<[1], [0], [0], [1], [0, 0, 1, 1], [], []>} : vector<128x243xf32>, vector<243x128xf32>, vector<128x128xf32> -> vector<128x128xf32>
    %c0_3 = arith.constant 0 : index
    %c0_4 = arith.constant 0 : index
    %3 = vector.load %arg3[%c0_3, %c0_4] : memref<1x128xf32, #tpu.memory_space<vmem>>, vector<1x128xf32>
    %4 = vector.broadcast %3 : vector<1x128xf32> to vector<128x128xf32>
    %5 = arith.addf %2, %4 : vector<128x128xf32>
    %cst_5 = arith.constant 0.000000e+00 : f32
    %6 = vector.broadcast %cst_5 : f32 to vector<128x128xf32>
    %7 = arith.maximumf %5, %6 : vector<128x128xf32>
    %c0_6 = arith.constant 0 : index
    %c0_7 = arith.constant 0 : index
    %8 = vector.load %arg4[%c0_6, %c0_7] : memref<128x128xf32, #tpu.memory_space<vmem>>, vector<128x128xf32>
    %cst_8 = arith.constant dense<0.000000e+00> : vector<128x128xf32>
    %9 = tpu.matmul %7, %8, %cst_8 {dimension_numbers = #tpu.dot_dimension_numbers<[1], [0], [0], [1], [0, 0, 1, 1], [], []>} : vector<128x128xf32>, vector<128x128xf32>, vector<128x128xf32> -> vector<128x128xf32>
    %c0_9 = arith.constant 0 : index
    %c0_10 = arith.constant 0 : index
    %10 = vector.load %arg5[%c0_9, %c0_10] : memref<1x128xf32, #tpu.memory_space<vmem>>, vector<1x128xf32>
    %11 = vector.broadcast %10 : vector<1x128xf32> to vector<128x128xf32>
    %12 = arith.addf %9, %11 : vector<128x128xf32>
    %cst_11 = arith.constant 0.000000e+00 : f32
    %13 = vector.broadcast %cst_11 : f32 to vector<128x128xf32>
    %14 = arith.maximumf %12, %13 : vector<128x128xf32>
    %c0_12 = arith.constant 0 : index
    %c0_13 = arith.constant 0 : index
    %15 = vector.load %arg6[%c0_12, %c0_13] : memref<128x128xf32, #tpu.memory_space<vmem>>, vector<128x128xf32>
    %cst_14 = arith.constant dense<0.000000e+00> : vector<128x128xf32>
    %16 = tpu.matmul %14, %15, %cst_14 {dimension_numbers = #tpu.dot_dimension_numbers<[1], [0], [0], [1], [0, 0, 1, 1], [], []>} : vector<128x128xf32>, vector<128x128xf32>, vector<128x128xf32> -> vector<128x128xf32>
    %c0_15 = arith.constant 0 : index
    %c0_16 = arith.constant 0 : index
    %17 = vector.load %arg7[%c0_15, %c0_16] : memref<1x128xf32, #tpu.memory_space<vmem>>, vector<1x128xf32>
    %18 = vector.broadcast %17 : vector<1x128xf32> to vector<128x128xf32>
    %19 = arith.addf %16, %18 : vector<128x128xf32>
    %cst_17 = arith.constant 0.000000e+00 : f32
    %20 = vector.broadcast %cst_17 : f32 to vector<128x128xf32>
    %21 = arith.maximumf %19, %20 : vector<128x128xf32>
    %c0_18 = arith.constant 0 : index
    %c0_19 = arith.constant 0 : index
    %22 = vector.load %arg8[%c0_18, %c0_19] : memref<8x128xf32, #tpu.memory_space<vmem>>, vector<8x128xf32>
    %cst_20 = arith.constant dense<0.000000e+00> : vector<8x128xf32>
    %23 = tpu.matmul %22, %21, %cst_20 {dimension_numbers = #tpu.dot_dimension_numbers<[1], [1], [0], [0], [0, 0, 1, 0], [], []>} : vector<8x128xf32>, vector<128x128xf32>, vector<8x128xf32> -> vector<8x128xf32>
    %24 = vector.extract_strided_slice %23 {offsets = [0, 0], sizes = [1, 128], strides = [1, 1]} : vector<8x128xf32> to vector<1x128xf32>
    %c0_21 = arith.constant 0 : index
    %25 = memref.load %arg9[%c0_21] : memref<1xf32, #tpu.memory_space<smem>>
    %26 = vector.broadcast %25 : f32 to vector<1x128xf32>
    %27 = arith.addf %24, %26 : vector<1x128xf32>
    %28 = vector.shape_cast %27 : vector<1x128xf32> to vector<1x1x128xf32>
    %c0_22 = arith.constant 0 : index
    %c0_23 = arith.constant 0 : index
    %c0_24 = arith.constant 0 : index
    %29 = vector.load %arg10[%c0_22, %c0_23, %c0_24] : memref<1x1x128xf32, #tpu.memory_space<vmem>>, vector<1x1x128xf32>
    tpu.vector_store %arg10[%c0_22, %c0_23, %c0_24], %28 {strides = array<i32>} : memref<1x1x128xf32, #tpu.memory_space<vmem>>, vector<1x1x128xf32>,
    return
  }
  func.func @transform_0(%arg0: i32) -> (i32, i32) {
    %c0_i32 = arith.constant 0 : i32
    %c0_i32_0 = arith.constant 0 : i32
    return %arg0, %c0_i32 : i32, i32
  }
  func.func @transform_1(%arg0: i32) -> (i32, i32) {
    %c0_i32 = arith.constant 0 : i32
    %c0_i32_0 = arith.constant 0 : i32
    %c0_i32_1 = arith.constant 0 : i32
    return %c0_i32, %c0_i32_0 : i32, i32
  }
  func.func @transform_2(%arg0: i32) -> (i32, i32) {
    %c0_i32 = arith.constant 0 : i32
    %c0_i32_0 = arith.constant 0 : i32
    %c0_i32_1 = arith.constant 0 : i32
    return %c0_i32, %c0_i32_0 : i32, i32
  }
  func.func @transform_3(%arg0: i32) -> (i32, i32) {
    %c0_i32 = arith.constant 0 : i32
    %c0_i32_0 = arith.constant 0 : i32
    %c0_i32_1 = arith.constant 0 : i32
    return %c0_i32, %c0_i32_0 : i32, i32
  }
  func.func @transform_4(%arg0: i32) -> (i32, i32) {
    %c0_i32 = arith.constant 0 : i32
    %c0_i32_0 = arith.constant 0 : i32
    %c0_i32_1 = arith.constant 0 : i32
    return %c0_i32, %c0_i32_0 : i32, i32
  }
  func.func @transform_5(%arg0: i32) -> (i32, i32) {
    %c0_i32 = arith.constant 0 : i32
    %c0_i32_0 = arith.constant 0 : i32
    %c0_i32_1 = arith.constant 0 : i32
    return %c0_i32, %c0_i32_0 : i32, i32
  }
  func.func @transform_6(%arg0: i32) -> (i32, i32) {
    %c0_i32 = arith.constant 0 : i32
    %c0_i32_0 = arith.constant 0 : i32
    %c0_i32_1 = arith.constant 0 : i32
    return %c0_i32, %c0_i32_0 : i32, i32
  }
  func.func @transform_7(%arg0: i32) -> (i32, i32) {
    %c0_i32 = arith.constant 0 : i32
    %c0_i32_0 = arith.constant 0 : i32
    %c0_i32_1 = arith.constant 0 : i32
    return %c0_i32, %c0_i32_0 : i32, i32
  }
  func.func @transform_8(%arg0: i32) -> i32 {
    %c0_i32 = arith.constant 0 : i32
    %c0_i32_0 = arith.constant 0 : i32
    return %c0_i32 : i32
  }
  func.func @transform_9(%arg0: i32) -> (i32, i32, i32) {
    %c0_i32 = arith.constant 0 : i32
    %c0_i32_0 = arith.constant 0 : i32
    %c0_i32_1 = arith.constant 0 : i32
    return %arg0, %c0_i32, %c0_i32_0 : i32, i32, i32
  }
}

</mosaic_0001>

<llo_original>
// kernel: tpu_custom_call.1
$region0: #{tpu_custom_call.1}
  #allocation0 [shape = 'u32[]', space=smem, size = 0x4, offset = 0x4, fixed_abs, tag = 'smem constant byte address 0x4 - core index']
  #allocation1 [shape = 'u32[144,128]{1,0:T(1,128)}', space=vmem, size = 0x12000, scoped, tag = 'internal scratch']
  #allocation2 [shape = 'f32[1]{0:T(128)S(6)}', space=smem, size = 0x200, scoped, tag = 'scoped memory for tpu_custom_call.1']
  %s0 = inlined_call_operand.hbm [shape: f32[8,243], index: 0, kind: input, shape index: {}]
  %s1 = inlined_call_operand.hbm [shape: f32[243,128], index: 1, kind: input, shape index: {}]
  %s2 = inlined_call_operand.vmem [shape: f32[1,128], index: 2, kind: input, shape index: {}]
  %s3 = inlined_call_operand.hbm [shape: f32[128,128], index: 3, kind: input, shape index: {}]
  %s4 = inlined_call_operand.vmem [shape: f32[1,128], index: 4, kind: input, shape index: {}]
  %s5 = inlined_call_operand.hbm [shape: f32[128,128], index: 5, kind: input, shape index: {}]
  %s6 = inlined_call_operand.vmem [shape: f32[1,128], index: 6, kind: input, shape index: {}]
  %s7 = inlined_call_operand.vmem [shape: f32[8,128], index: 7, kind: input, shape index: {}]
  %s8 = inlined_call_operand.<no memory space> [shape: f32[1], index: 8, kind: input, shape index: {}]
  %s9 = inlined_call_operand.hbm [shape: f32[1,1,128], index: 9, kind: output, shape index: {}]
  %s10 = sld [smem:[#allocation0]]
  $region62: #{tpu_custom_call.1} parent=0
    _
  %s12 = ssub.s32 1, %s10
  %s13 = scalar_select 0, %s12, %s10
  %14 = sst [smem:[#allocation2]] %s8
  $region1: #{tpu_custom_call.1} parent=0
    #allocation3 [shape = 'u8[131072]{0}', space=vmem, size = 0x20000, scoped, tag = 'input window, operand 0, single buffered']
    #allocation4 [shape = 's32[1]{0}', space=sflag, size = 0x4, scoped, tag = 'scoped memory for tpu_custom_call.1']
    #allocation5 [shape = 's32[1]{0}', space=sflag, size = 0x4, scoped, tag = 'scoped memory for tpu_custom_call.1']
    #allocation6 [shape = 'u8[126976]{0}', space=vmem, size = 0x1f000, scoped, tag = 'input window, operand 1, single buffered']
    #allocation7 [shape = 's32[1]{0}', space=sflag, size = 0x4, scoped, tag = 'scoped memory for tpu_custom_call.1']
    #allocation8 [shape = 'u8[65536]{0}', space=vmem, size = 0x10000, scoped, tag = 'input window, operand 3, single buffered']
    #allocation9 [shape = 'u8[65536]{0}', space=vmem, size = 0x10000, scoped, tag = 'input window, operand 5, single buffered']
    #allocation10 [shape = 's32[1]{0}', space=sflag, size = 0x4, scoped, tag = 'scoped memory for tpu_custom_call.1']
    #allocation11 [shape = 'u8[512]{0}', space=vmem, size = 0x400, scoped, tag = 'output window, operand 0, single buffered']
    %15 = vsyncpa [#allocation4], 0
    %16 = vsyncpa [#allocation7], 0
    %17 = vsyncpa [#allocation10], 0
    %18 = vsyncpa [#allocation5], 0
    // Predicated region
    $region2: #{tpu_custom_call.1} parent=1 // pred_check
      _
    $region3: #{tpu_custom_call.1} parent=1 // pred_check_branch
      %20 = sbr.rel (0) target = $region5
    $region4: #{tpu_custom_call.1} parent=1 // pred_region
      %s22 = ssub.s32 4096, 256
      %23 = vsyncadd [#allocation4], %s22
      %s24 = sshll.u32 [#allocation3], 4
      %s25 = int_to_ptr.vmem [resolvable:$true] %s24
      %30 = dma.hbm_to_vmem [thread:$0]  %s0, 256, %s25, [#allocation4], 256, 256, 16
    $region5: #{tpu_custom_call.1} parent=1 // pred_fallthru
      _
    // Predicated region
    $region6: #{tpu_custom_call.1} parent=1 // pred_check
      _
    $region7: #{tpu_custom_call.1} parent=1 // pred_check_branch
      %32 = sbr.rel (0) target = $region9
    $region8: #{tpu_custom_call.1} parent=1 // pred_region
      %s34 = ssub.s32 3968, 3968
      %35 = vsyncadd [#allocation7], %s34
      %s36 = sshll.u32 [#allocation6], 4
      %s37 = int_to_ptr.vmem [resolvable:$true] %s36
      %42 = dma.hbm_to_vmem [thread:$0]  %s1, 3968, %s37, [#allocation7], 128, 128, 8
    $region9: #{tpu_custom_call.1} parent=1 // pred_fallthru
      _
    // Predicated region
    $region10: #{tpu_custom_call.1} parent=1 // pred_check
      _
    $region11: #{tpu_custom_call.1} parent=1 // pred_check_branch
      %44 = sbr.rel (0) target = $region13
    $region12: #{tpu_custom_call.1} parent=1 // pred_region
      _
    $region13: #{tpu_custom_call.1} parent=1 // pred_fallthru
      _
    // Predicated region
    $region14: #{tpu_custom_call.1} parent=1 // pred_check
      _
    $region15: #{tpu_custom_call.1} parent=1 // pred_check_branch
      %46 = sbr.rel (0) target = $region17
    $region16: #{tpu_custom_call.1} parent=1 // pred_region
      %s48 = ssub.s32 2048, 2048
      %49 = vsyncadd [#allocation7], %s48
      %s50 = sshll.u32 [#allocation8], 4
      %s51 = int_to_ptr.vmem [resolvable:$true] %s50
      %56 = dma.hbm_to_vmem [thread:$0]  %s3, 2048, %s51, [#allocation7], 128, 128, 8
    $region17: #{tpu_custom_call.1} parent=1 // pred_fallthru
      _
    // Predicated region
    $region18: #{tpu_custom_call.1} parent=1 // pred_check
      _
    $region19: #{tpu_custom_call.1} parent=1 // pred_check_branch
      %58 = sbr.rel (0) target = $region21
    $region20: #{tpu_custom_call.1} parent=1 // pred_region
      _
    $region21: #{tpu_custom_call.1} parent=1 // pred_fallthru
      _
    // Predicated region
    $region22: #{tpu_custom_call.1} parent=1 // pred_check
      _
    $region23: #{tpu_custom_call.1} parent=1 // pred_check_branch
      %60 = sbr.rel (0) target = $region25
    $region24: #{tpu_custom_call.1} parent=1 // pred_region
      %s62 = ssub.s32 2048, 2048
      %63 = vsyncadd [#allocation10], %s62
      %s64 = sshll.u32 [#allocation9], 4
      %s65 = int_to_ptr.vmem [resolvable:$true] %s64
      %70 = dma.hbm_to_vmem [thread:$0]  %s5, 2048, %s65, [#allocation10], 128, 128, 8
    $region25: #{tpu_custom_call.1} parent=1 // pred_fallthru
      _
    // Predicated region
    $region26: #{tpu_custom_call.1} parent=1 // pred_check
      _
    $region27: #{tpu_custom_call.1} parent=1 // pred_check_branch
      %72 = sbr.rel (0) target = $region29
    $region28: #{tpu_custom_call.1} parent=1 // pred_region
      _
    $region29: #{tpu_custom_call.1} parent=1 // pred_fallthru
      _
    // Predicated region
    $region30: #{tpu_custom_call.1} parent=1 // pred_check
      _
    $region31: #{tpu_custom_call.1} parent=1 // pred_check_branch
      %74 = sbr.rel (0) target = $region33
    $region32: #{tpu_custom_call.1} parent=1 // pred_region
      _
    $region33: #{tpu_custom_call.1} parent=1 // pred_fallthru
      _
    // Predicated region
    $region34: #{tpu_custom_call.1} parent=1 // pred_check
      _
    $region35: #{tpu_custom_call.1} parent=1 // pred_check_branch
      %76 = sbr.rel (0) target = $region37
    $region36: #{tpu_custom_call.1} parent=1 // pred_region
      _
    $region37: #{tpu_custom_call.1} parent=1 // pred_fallthru
      _
    // Predicated region
    $region38: #{tpu_custom_call.1} parent=1 // pred_check
      _
    $region39: #{tpu_custom_call.1} parent=1 // pred_check_branch
      %78 = sbr.rel (0) target = $region41
    $region40: #{tpu_custom_call.1} parent=1 // pred_region
      %79 = dma.done [#allocation4], 4096
    $region41: #{tpu_custom_call.1} parent=1 // pred_fallthru
      _
    // Predicated region
    $region42: #{tpu_custom_call.1} parent=1 // pred_check
      _
    $region43: #{tpu_custom_call.1} parent=1 // pred_check_branch
      %81 = sbr.rel (0) target = $region45
    $region44: #{tpu_custom_call.1} parent=1 // pred_region
      %82 = dma.done [#allocation7], 3968
    $region45: #{tpu_custom_call.1} parent=1 // pred_fallthru
      _
    // Predicated region
    $region46: #{tpu_custom_call.1} parent=1 // pred_check
      _
    $region47: #{tpu_custom_call.1} parent=1 // pred_check_branch
      %84 = sbr.rel (0) target = $region49
    $region48: #{tpu_custom_call.1} parent=1 // pred_region
      %85 = dma.done [#allocation7], 2048
    $region49: #{tpu_custom_call.1} parent=1 // pred_fallthru
      _
    // Predicated region
    $region50: #{tpu_custom_call.1} parent=1 // pred_check
      _
    $region51: #{tpu_custom_call.1} parent=1 // pred_check_branch
      %87 = sbr.rel (0) target = $region53
    $region52: #{tpu_custom_call.1} parent=1 // pred_region
      %88 = dma.done [#allocation10], 2048
    $region53: #{tpu_custom_call.1} parent=1 // pred_fallthru
      _
    %v89 = vld [vmem:[#allocation3] sm:$0xff]
    %v90 = vld [vmem:[#allocation3 + $0x8] sm:$0xff]
    %v91 = vld [vmem:[#allocation3 + $0x10] sm:$0xff]
    %v92 = vld [vmem:[#allocation3 + $0x18] sm:$0xff]
    %v93 = vld [vmem:[#allocation3 + $0x20] sm:$0xff]
    %v94 = vld [vmem:[#allocation3 + $0x28] sm:$0xff]
    %v95 = vld [vmem:[#allocation3 + $0x30] sm:$0xff]
    %v96 = vld [vmem:[#allocation3 + $0x38] sm:$0xff]
    %v97 = vld [vmem:[#allocation3 + $0x40] sm:$0xff]
    %v98 = vld [vmem:[#allocation3 + $0x48] sm:$0xff]
    %v99 = vld [vmem:[#allocation3 + $0x50] sm:$0xff]
    %v100 = vld [vmem:[#allocation3 + $0x58] sm:$0xff]
    %v101 = vld [vmem:[#allocation3 + $0x60] sm:$0xff]
    %v102 = vld [vmem:[#allocation3 + $0x68] sm:$0xff]
    %v103 = vld [vmem:[#allocation3 + $0x70] sm:$0xff]
    %v104 = vld [vmem:[#allocation3 + $0x78] sm:$0xff]
    %v105 = vld [vmem:[#allocation3 + $0x80] sm:$0xff]
    %v106 = vld [vmem:[#allocation3 + $0x88] sm:$0xff]
    %v107 = vld [vmem:[#allocation3 + $0x90] sm:$0xff]
    %v108 = vld [vmem:[#allocation3 + $0x98] sm:$0xff]
    %v109 = vld [vmem:[#allocation3 + $0xa0] sm:$0xff]
    %v110 = vld [vmem:[#allocation3 + $0xa8] sm:$0xff]
    %v111 = vld [vmem:[#allocation3 + $0xb0] sm:$0xff]
    %v112 = vld [vmem:[#allocation3 + $0xb8] sm:$0xff]
    %v113 = vld [vmem:[#allocation3 + $0xc0] sm:$0xff]
    %v114 = vld [vmem:[#allocation3 + $0xc8] sm:$0xff]
    %v115 = vld [vmem:[#allocation3 + $0xd0] sm:$0xff]
    %v116 = vld [vmem:[#allocation3 + $0xd8] sm:$0xff]
    %v117 = vld [vmem:[#allocation3 + $0xe0] sm:$0xff]
    %v118 = vld [vmem:[#allocation3 + $0xe8] sm:$0xff]
    %v119 = vld [vmem:[#allocation3 + $0xf0] sm:$0xff]
    %v120 = vld [vmem:[#allocation3 + $0xf8] sm:$0xff]
    %v121 = vld [vmem:[#allocation6] sm:$0xff]
    %v122 = vld [vmem:[#allocation6 + $0x8] sm:$0xff]
    %v123 = vld [vmem:[#allocation6 + $0x10] sm:$0xff]
    %v124 = vld [vmem:[#allocation6 + $0x18] sm:$0xff]
    %v125 = vld [vmem:[#allocation6 + $0x20] sm:$0xff]
    %v126 = vld [vmem:[#allocation6 + $0x28] sm:$0xff]
    %v127 = vld [vmem:[#allocation6 + $0x30] sm:$0xff]
    %v128 = vld [vmem:[#allocation6 + $0x38] sm:$0xff]
    %v129 = vld [vmem:[#allocation6 + $0x40] sm:$0xff]
    %v130 = vld [vmem:[#allocation6 + $0x48] sm:$0xff]
    %v131 = vld [vmem:[#allocation6 + $0x50] sm:$0xff]
    %v132 = vld [vmem:[#allocation6 + $0x58] sm:$0xff]
    %v133 = vld [vmem:[#allocation6 + $0x60] sm:$0xff]
    %v134 = vld [vmem:[#allocation6 + $0x68] sm:$0xff]
    %v135 = vld [vmem:[#allocation6 + $0x70] sm:$0xff]
    %v136 = vld [vmem:[#allocation6 + $0x78] sm:$0xff]
    %v137 = vld [vmem:[#allocation6 + $0x80] sm:$0xff]
    %v138 = vld [vmem:[#allocation6 + $0x88] sm:$0xff]
    %v139 = vld [vmem:[#allocation6 + $0x90] sm:$0xff]
    %v140 = vld [vmem:[#allocation6 + $0x98] sm:$0xff]
    %v141 = vld [vmem:[#allocation6 + $0xa0] sm:$0xff]
    %v142 = vld [vmem:[#allocation6 + $0xa8] sm:$0xff]
    %v143 = vld [vmem:[#allocation6 + $0xb0] sm:$0xff]
    %v144 = vld [vmem:[#allocation6 + $0xb8] sm:$0xff]
    %v145 = vld [vmem:[#allocation6 + $0xc0] sm:$0xff]
    %v146 = vld [vmem:[#allocation6 + $0xc8] sm:$0xff]
    %v147 = vld [vmem:[#allocation6 + $0xd0] sm:$0xff]
    %v148 = vld [vmem:[#allocation6 + $0xd8] sm:$0xff]
    %v149 = vld [vmem:[#allocation6 + $0xe0] sm:$0xff]
    %v150 = vld [vmem:[#allocation6 + $0xe8] sm:$0xff]
    %v151 = vld [vmem:[#allocation6 + $0xf0] sm:$0x7]
    %v152 = vld [vmem:[%s2] sm:$0x1]
    %v154 = vlaneseq
    %v155 = vshrl.u32 %v154, 7
    %v156 = vsub.s32 0, %v155
    %v157 = vrot.slane %v152, %v156
    %vm159 = vcmask 941056
    %v161 = vsel %vm159, %v90, 0
    %v164 = vsel %vm159, %v92, 0
    %v167 = vsel %vm159, %v94, 0
    %v170 = vsel %vm159, %v96, 0
    %v173 = vsel %vm159, %v98, 0
    %v176 = vsel %vm159, %v100, 0
    %v179 = vsel %vm159, %v102, 0
    %v182 = vsel %vm159, %v104, 0
    %v185 = vsel %vm159, %v106, 0
    %v188 = vsel %vm159, %v108, 0
    %v191 = vsel %vm159, %v110, 0
    %v194 = vsel %vm159, %v112, 0
    %v197 = vsel %vm159, %v114, 0
    %v200 = vsel %vm159, %v116, 0
    %v203 = vsel %vm159, %v118, 0
    %v206 = vsel %vm159, %v120, 0
    %vm208 = vcmask 1042432
    %v210 = vsel %vm208, %v151, 0
    %212 = vmatprep.subr.mxu0 0.0
    %213 = vmatpush1.msra.mxu0 %v121
    %214 = vmatprep.subr.mxu0 0.0
    %215 = vmatpush1.msra.mxu0 %v122
    %216 = vmatprep.subr.mxu0 0.0
    %217 = vmatpush1.msra.mxu0 %v123
    %218 = vmatprep.subr.mxu0 0.0
    %219 = vmatpush1.msra.mxu0 %v124
    %220 = vmatprep.subr.mxu0 0.0
    %221 = vmatpush1.msra.mxu0 %v125
    %222 = vmatprep.subr.mxu0 0.0
    %223 = vmatpush1.msra.mxu0 %v126
    %224 = vmatprep.subr.mxu0 0.0
    %225 = vmatpush1.msra.mxu0 %v127
    %226 = vmatprep.subr.mxu0 0.0
    %227 = vmatpush1.msra.mxu0 %v128
    %228 = vmatprep.subr.mxu0 0.0
    %229 = vmatpush1.msra.mxu0 %v129
    %230 = vmatprep.subr.mxu0 0.0
    %231 = vmatpush1.msra.mxu0 %v130
    %232 = vmatprep.subr.mxu0 0.0
    %233 = vmatpush1.msra.mxu0 %v131
    %234 = vmatprep.subr.mxu0 0.0
    %235 = vmatpush1.msra.mxu0 %v132
    %236 = vmatprep.subr.mxu0 0.0
    %237 = vmatpush1.msra.mxu0 %v133
    %238 = vmatprep.subr.mxu0 0.0
    %239 = vmatpush1.msra.mxu0 %v134
    %240 = vmatprep.subr.mxu0 0.0
    %241 = vmatpush1.msra.mxu0 %v135
    %242 = vmatprep.subr.mxu0 0.0
    %243 = vmatpush1.msra.mxu0 %v136
    %244 = vmatprep.subr.mxu0 0.0
    %245 = vmatpush1.msra.mxu0 %v137
    %246 = vmatprep.subr.mxu0 0.0
    %247 = vmatpush1.msra.mxu0 %v138
    %248 = vmatprep.subr.mxu0 0.0
    %249 = vmatpush1.msra.mxu0 %v139
    %250 = vmatprep.subr.mxu0 0.0
    %251 = vmatpush1.msra.mxu0 %v140
    %252 = vmatprep.subr.mxu0 0.0
    %253 = vmatpush1.msra.mxu0 %v141
    %254 = vmatprep.subr.mxu0 0.0
    %255 = vmatpush1.msra.mxu0 %v142
    %256 = vmatprep.subr.mxu0 0.0
    %257 = vmatpush1.msra.mxu0 %v143
    %258 = vmatprep.subr.mxu0 0.0
    %259 = vmatpush1.msra.mxu0 %v144
    %260 = vmatprep.subr.mxu0 0.0
    %261 = vmatpush1.msra.mxu0 %v145
    %262 = vmatprep.subr.mxu0 0.0
    %263 = vmatpush1.msra.mxu0 %v146
    %264 = vmatprep.subr.mxu0 0.0
    %265 = vmatpush1.msra.mxu0 %v147
    %266 = vmatprep.subr.mxu0 0.0
    %267 = vmatpush1.msra.mxu0 %v148
    %268 = vmatprep.subr.mxu0 0.0
    %269 = vmatpush1.msra.mxu0 %v149
    %270 = vmatprep.subr.mxu0 0.0
    %271 = vmatpush1.msra.mxu0 %v150
    %272 = vmatprep.subr.mxu0 0.0
    %273 = vmatpush1.msra.mxu0 %v210
    %274 = vmatprep.subr.mxu0 0.0
    %275 = vmatpush1.msra.mxu0 0.0
    %276 = vmatprep.mubr.f32.mxu0 %v161
    %277 = vmatmul.mubr.f32.gmra.mrb[0].mxu0 %v89
    %v278 = vpop.f32.mrb[0].mxu0
    %v279 = vadd.f32 %v157, %v278
    %v280 = vpop.f32.mrb[0].mxu0
    %281 = vmatprep.mubr.f32.mxu0 %v164
    %282 = vmatmul.mubr.f32.gmra.mrb[0].mxu0 %v91
    %v283 = vpop.f32.mrb[0].mxu0
    %v284 = vadd.f32 %v157, %v283
    %v285 = vpop.f32.mrb[0].mxu0
    %286 = vmatprep.mubr.f32.mxu0 %v167
    %287 = vmatmul.mubr.f32.gmra.mrb[0].mxu0 %v93
    %v288 = vpop.f32.mrb[0].mxu0
    %v289 = vadd.f32 %v157, %v288
    %v290 = vpop.f32.mrb[0].mxu0
    %291 = vmatprep.mubr.f32.mxu0 %v170
    %292 = vmatmul.mubr.f32.gmra.mrb[0].mxu0 %v95
    %v293 = vpop.f32.mrb[0].mxu0
    %v294 = vadd.f32 %v157, %v293
    %v295 = vpop.f32.mrb[0].mxu0
    %296 = vmatprep.mubr.f32.mxu0 %v173
    %297 = vmatmul.mubr.f32.gmra.mrb[0].mxu0 %v97
    %v298 = vpop.f32.mrb[0].mxu0
    %v299 = vadd.f32 %v157, %v298
    %v300 = vpop.f32.mrb[0].mxu0
    %301 = vmatprep.mubr.f32.mxu0 %v176
    %302 = vmatmul.mubr.f32.gmra.mrb[0].mxu0 %v99
    %v303 = vpop.f32.mrb[0].mxu0
    %v304 = vadd.f32 %v157, %v303
    %v305 = vpop.f32.mrb[0].mxu0
    %306 = vmatprep.mubr.f32.mxu0 %v179
    %307 = vmatmul.mubr.f32.gmra.mrb[0].mxu0 %v101
    %v308 = vpop.f32.mrb[0].mxu0
    %v309 = vadd.f32 %v157, %v308
    %v310 = vpop.f32.mrb[0].mxu0
    %311 = vmatprep.mubr.f32.mxu0 %v182
    %312 = vmatmul.mubr.f32.gmra.mrb[0].mxu0 %v103
    %v313 = vpop.f32.mrb[0].mxu0
    %v314 = vadd.f32 %v157, %v313
    %v315 = vpop.f32.mrb[0].mxu0
    %316 = vmatprep.mubr.f32.mxu0 %v185
    %317 = vmatmul.mubr.f32.gmra.mrb[0].mxu0 %v105
    %v318 = vpop.f32.mrb[0].mxu0
    %v319 = vadd.f32 %v157, %v318
    %v320 = vpop.f32.mrb[0].mxu0
    %321 = vmatprep.mubr.f32.mxu0 %v188
    %322 = vmatmul.mubr.f32.gmra.mrb[0].mxu0 %v107
    %v323 = vpop.f32.mrb[0].mxu0
    %v324 = vadd.f32 %v157, %v323
    %v325 = vpop.f32.mrb[0].mxu0
    %326 = vmatprep.mubr.f32.mxu0 %v191
    %327 = vmatmul.mubr.f32.gmra.mrb[0].mxu0 %v109
    %v328 = vpop.f32.mrb[0].mxu0
    %v329 = vadd.f32 %v157, %v328
    %v330 = vpop.f32.mrb[0].mxu0
    %331 = vmatprep.mubr.f32.mxu0 %v194
    %332 = vmatmul.mubr.f32.gmra.mrb[0].mxu0 %v111
    %v333 = vpop.f32.mrb[0].mxu0
    %v334 = vadd.f32 %v157, %v333
    %v335 = vpop.f32.mrb[0].mxu0
    %336 = vmatprep.mubr.f32.mxu0 %v197
    %337 = vmatmul.mubr.f32.gmra.mrb[0].mxu0 %v113
    %v338 = vpop.f32.mrb[0].mxu0
    %v339 = vadd.f32 %v157, %v338
    %v340 = vpop.f32.mrb[0].mxu0
    %341 = vmatprep.mubr.f32.mxu0 %v200
    %342 = vmatmul.mubr.f32.gmra.mrb[0].mxu0 %v115
    %v343 = vpop.f32.mrb[0].mxu0
    %v344 = vadd.f32 %v157, %v343
    %v345 = vpop.f32.mrb[0].mxu0
    %346 = vmatprep.mubr.f32.mxu0 %v203
    %347 = vmatmul.mubr.f32.gmra.mrb[0].mxu0 %v117
    %v348 = vpop.f32.mrb[0].mxu0
    %v349 = vadd.f32 %v157, %v348
    %v350 = vpop.f32.mrb[0].mxu0
    %351 = vmatprep.mubr.f32.mxu0 %v206
    %352 = vmatmul.mubr.f32.gmra.mrb[0].mxu0 %v119
    %v353 = vpop.f32.mrb[0].mxu0
    %v354 = vadd.f32 %v157, %v353
    %v355 = vpop.f32.mrb[0].mxu0
    %356 = vdwg.mxu0
    %v357 = vmax.f32 %v279, 0.0
    %v358 = vmax.f32 %v284, 0.0
    %v359 = vmax.f32 %v289, 0.0
    %v360 = vmax.f32 %v294, 0.0
    %v361 = vmax.f32 %v299, 0.0
    %v362 = vmax.f32 %v304, 0.0
    %v363 = vmax.f32 %v309, 0.0
    %v364 = vmax.f32 %v314, 0.0
    %v365 = vmax.f32 %v319, 0.0
    %v366 = vmax.f32 %v324, 0.0
    %v367 = vmax.f32 %v329, 0.0
    %v368 = vmax.f32 %v334, 0.0
    %v369 = vmax.f32 %v339, 0.0
    %v370 = vmax.f32 %v344, 0.0
    %v371 = vmax.f32 %v349, 0.0
    %v372 = vmax.f32 %v354, 0.0
    %v373 = vld [vmem:[#allocation8] sm:$0xff]
    %v374 = vld [vmem:[#allocation8 + $0x8] sm:$0xff]
    %v375 = vld [vmem:[#allocation8 + $0x10] sm:$0xff]
    %v376 = vld [vmem:[#allocation8 + $0x18] sm:$0xff]
    %v377 = vld [vmem:[#allocation8 + $0x20] sm:$0xff]
    %v378 = vld [vmem:[#allocation8 + $0x28] sm:$0xff]
    %v379 = vld [vmem:[#allocation8 + $0x30] sm:$0xff]
    %v380 = vld [vmem:[#allocation8 + $0x38] sm:$0xff]
    %v381 = vld [vmem:[#allocation8 + $0x40] sm:$0xff]
    %v382 = vld [vmem:[#allocation8 + $0x48] sm:$0xff]
    %v383 = vld [vmem:[#allocation8 + $0x50] sm:$0xff]
    %v384 = vld [vmem:[#allocation8 + $0x58] sm:$0xff]
    %v385 = vld [vmem:[#allocation8 + $0x60] sm:$0xff]
    %v386 = vld [vmem:[#allocation8 + $0x68] sm:$0xff]
    %v387 = vld [vmem:[#allocation8 + $0x70] sm:$0xff]
    %v388 = vld [vmem:[#allocation8 + $0x78] sm:$0xff]
    %v389 = vld [vmem:[%s4] sm:$0x1]
    %v391 = vlaneseq
    %v392 = vshrl.u32 %v391, 7
    %v393 = vsub.s32 0, %v392
    %v394 = vrot.slane %v389, %v393
    %396 = vmatprep.subr.mxu0 0.0
    %397 = vmatpush1.msra.mxu0 %v373
    %398 = vmatprep.subr.mxu0 0.0
    %399 = vmatpush1.msra.mxu0 %v374
    %400 = vmatprep.subr.mxu0 0.0
    %401 = vmatpush1.msra.mxu0 %v375
    %402 = vmatprep.subr.mxu0 0.0
    %403 = vmatpush1.msra.mxu0 %v376
    %404 = vmatprep.subr.mxu0 0.0
    %405 = vmatpush1.msra.mxu0 %v377
    %406 = vmatprep.subr.mxu0 0.0
    %407 = vmatpush1.msra.mxu0 %v378
    %408 = vmatprep.subr.mxu0 0.0
    %409 = vmatpush1.msra.mxu0 %v379
    %410 = vmatprep.subr.mxu0 0.0
    %411 = vmatpush1.msra.mxu0 %v380
    %412 = vmatprep.subr.mxu0 0.0
    %413 = vmatpush1.msra.mxu0 %v381
    %414 = vmatprep.subr.mxu0 0.0
    %415 = vmatpush1.msra.mxu0 %v382
    %416 = vmatprep.subr.mxu0 0.0
    %417 = vmatpush1.msra.mxu0 %v383
    %418 = vmatprep.subr.mxu0 0.0
    %419 = vmatpush1.msra.mxu0 %v384
    %420 = vmatprep.subr.mxu0 0.0
    %421 = vmatpush1.msra.mxu0 %v385
    %422 = vmatprep.subr.mxu0 0.0
    %423 = vmatpush1.msra.mxu0 %v386
    %424 = vmatprep.subr.mxu0 0.0
    %425 = vmatpush1.msra.mxu0 %v387
    %426 = vmatprep.subr.mxu0 0.0
    %427 = vmatpush1.msra.mxu0 %v388
    %428 = vmatprep.subr.mxu0 0.0
    %429 = vmatpush1.msra.mxu0 0.0
    %430 = vmatprep.subr.mxu0 0.0
    %431 = vmatpush1.msra.mxu0 0.0
    %432 = vmatprep.subr.mxu0 0.0
    %433 = vmatpush1.msra.mxu0 0.0
    %434 = vmatprep.subr.mxu0 0.0
    %435 = vmatpush1.msra.mxu0 0.0
    %436 = vmatprep.subr.mxu0 0.0
    %437 = vmatpush1.msra.mxu0 0.0
    %438 = vmatprep.subr.mxu0 0.0
    %439 = vmatpush1.msra.mxu0 0.0
    %440 = vmatprep.subr.mxu0 0.0
    %441 = vmatpush1.msra.mxu0 0.0
    %442 = vmatprep.subr.mxu0 0.0
    %443 = vmatpush1.msra.mxu0 0.0
    %444 = vmatprep.subr.mxu0 0.0
    %445 = vmatpush1.msra.mxu0 0.0
    %446 = vmatprep.subr.mxu0 0.0
    %447 = vmatpush1.msra.mxu0 0.0
    %448 = vmatprep.subr.mxu0 0.0
    %449 = vmatpush1.msra.mxu0 0.0
    %450 = vmatprep.subr.mxu0 0.0
    %451 = vmatpush1.msra.mxu0 0.0
    %452 = vmatprep.subr.mxu0 0.0
    %453 = vmatpush1.msra.mxu0 0.0
    %454 = vmatprep.subr.mxu0 0.0
    %455 = vmatpush1.msra.mxu0 0.0
    %456 = vmatprep.subr.mxu0 0.0
    %457 = vmatpush1.msra.mxu0 0.0
    %458 = vmatprep.subr.mxu0 0.0
    %459 = vmatpush1.msra.mxu0 0.0
    %460 = vmatprep.mubr.f32.mxu0 0.0
    %461 = vmatmul.mubr.f32.gmra.mrb[0].mxu0 %v357
    %v462 = vpop.f32.mrb[0].mxu0
    %v463 = vadd.f32 %v394, %v462
    %v464 = vpop.f32.mrb[0].mxu0
    %465 = vmatprep.mubr.f32.mxu0 0.0
    %466 = vmatmul.mubr.f32.gmra.mrb[0].mxu0 %v358
    %v467 = vpop.f32.mrb[0].mxu0
    %v468 = vadd.f32 %v394, %v467
    %v469 = vpop.f32.mrb[0].mxu0
    %470 = vmatprep.mubr.f32.mxu0 0.0
    %471 = vmatmul.mubr.f32.gmra.mrb[0].mxu0 %v359
    %v472 = vpop.f32.mrb[0].mxu0
    %v473 = vadd.f32 %v394, %v472
    %v474 = vpop.f32.mrb[0].mxu0
    %475 = vmatprep.mubr.f32.mxu0 0.0
    %476 = vmatmul.mubr.f32.gmra.mrb[0].mxu0 %v360
    %v477 = vpop.f32.mrb[0].mxu0
    %v478 = vadd.f32 %v394, %v477
    %v479 = vpop.f32.mrb[0].mxu0
    %480 = vmatprep.mubr.f32.mxu0 0.0
    %481 = vmatmul.mubr.f32.gmra.mrb[0].mxu0 %v361
    %v482 = vpop.f32.mrb[0].mxu0
    %v483 = vadd.f32 %v394, %v482
    %v484 = vpop.f32.mrb[0].mxu0
    %485 = vmatprep.mubr.f32.mxu0 0.0
    %486 = vmatmul.mubr.f32.gmra.mrb[0].mxu0 %v362
    %v487 = vpop.f32.mrb[0].mxu0
    %v488 = vadd.f32 %v394, %v487
    %v489 = vpop.f32.mrb[0].mxu0
    %490 = vmatprep.mubr.f32.mxu0 0.0
    %491 = vmatmul.mubr.f32.gmra.mrb[0].mxu0 %v363
    %v492 = vpop.f32.mrb[0].mxu0
    %v493 = vadd.f32 %v394, %v492
    %v494 = vpop.f32.mrb[0].mxu0
    %495 = vmatprep.mubr.f32.mxu0 0.0
    %496 = vmatmul.mubr.f32.gmra.mrb[0].mxu0 %v364
    %v497 = vpop.f32.mrb[0].mxu0
    %v498 = vadd.f32 %v394, %v497
    %v499 = vpop.f32.mrb[0].mxu0
    %500 = vmatprep.mubr.f32.mxu0 0.0
    %501 = vmatmul.mubr.f32.gmra.mrb[0].mxu0 %v365
    %v502 = vpop.f32.mrb[0].mxu0
    %v503 = vadd.f32 %v394, %v502
    %v504 = vpop.f32.mrb[0].mxu0
    %505 = vmatprep.mubr.f32.mxu0 0.0
    %506 = vmatmul.mubr.f32.gmra.mrb[0].mxu0 %v366
    %v507 = vpop.f32.mrb[0].mxu0
    %v508 = vadd.f32 %v394, %v507
    %v509 = vpop.f32.mrb[0].mxu0
    %510 = vmatprep.mubr.f32.mxu0 0.0
    %511 = vmatmul.mubr.f32.gmra.mrb[0].mxu0 %v367
    %v512 = vpop.f32.mrb[0].mxu0
    %v513 = vadd.f32 %v394, %v512
    %v514 = vpop.f32.mrb[0].mxu0
    %515 = vmatprep.mubr.f32.mxu0 0.0
    %516 = vmatmul.mubr.f32.gmra.mrb[0].mxu0 %v368
    %v517 = vpop.f32.mrb[0].mxu0
    %v518 = vadd.f32 %v394, %v517
    %v519 = vpop.f32.mrb[0].mxu0
    %520 = vmatprep.mubr.f32.mxu0 0.0
    %521 = vmatmul.mubr.f32.gmra.mrb[0].mxu0 %v369
    %v522 = vpop.f32.mrb[0].mxu0
    %v523 = vadd.f32 %v394, %v522
    %v524 = vpop.f32.mrb[0].mxu0
    %525 = vmatprep.mubr.f32.mxu0 0.0
    %526 = vmatmul.mubr.f32.gmra.mrb[0].mxu0 %v370
    %v527 = vpop.f32.mrb[0].mxu0
    %v528 = vadd.f32 %v394, %v527
    %v529 = vpop.f32.mrb[0].mxu0
    %530 = vmatprep.mubr.f32.mxu0 0.0
    %531 = vmatmul.mubr.f32.gmra.mrb[0].mxu0 %v371
    %v532 = vpop.f32.mrb[0].mxu0
    %v533 = vadd.f32 %v394, %v532
    %v534 = vpop.f32.mrb[0].mxu0
    %535 = vmatprep.mubr.f32.mxu0 0.0
    %536 = vmatmul.mubr.f32.gmra.mrb[0].mxu0 %v372
    %v537 = vpop.f32.mrb[0].mxu0
    %v538 = vadd.f32 %v394, %v537
    %v539 = vpop.f32.mrb[0].mxu0
    %540 = vdwg.mxu0
    %v541 = vmax.f32 %v463, 0.0
    %v542 = vmax.f32 %v468, 0.0
    %v543 = vmax.f32 %v473, 0.0
    %v544 = vmax.f32 %v478, 0.0
    %v545 = vmax.f32 %v483, 0.0
    %v546 = vmax.f32 %v488, 0.0
    %v547 = vmax.f32 %v493, 0.0
    %v548 = vmax.f32 %v498, 0.0
    %v549 = vmax.f32 %v503, 0.0
    %v550 = vmax.f32 %v508, 0.0
    %v551 = vmax.f32 %v513, 0.0
    %v552 = vmax.f32 %v518, 0.0
    %v553 = vmax.f32 %v523, 0.0
    %v554 = vmax.f32 %v528, 0.0
    %v555 = vmax.f32 %v533, 0.0
    %v556 = vmax.f32 %v538, 0.0
    %v557 = vld [vmem:[#allocation9] sm:$0xff]
    %v558 = vld [vmem:[#allocation9 + $0x8] sm:$0xff]
    %v559 = vld [vmem:[#allocation9 + $0x10] sm:$0xff]
    %v560 = vld [vmem:[#allocation9 + $0x18] sm:$0xff]
    %v561 = vld [vmem:[#allocation9 + $0x20] sm:$0xff]
    %v562 = vld [vmem:[#allocation9 + $0x28] sm:$0xff]
    %v563 = vld [vmem:[#allocation9 + $0x30] sm:$0xff]
    %v564 = vld [vmem:[#allocation9 + $0x38] sm:$0xff]
    %v565 = vld [vmem:[#allocation9 + $0x40] sm:$0xff]
    %v566 = vld [vmem:[#allocation9 + $0x48] sm:$0xff]
    %v567 = vld [vmem:[#allocation9 + $0x50] sm:$0xff]
    %v568 = vld [vmem:[#allocation9 + $0x58] sm:$0xff]
    %v569 = vld [vmem:[#allocation9 + $0x60] sm:$0xff]
    %v570 = vld [vmem:[#allocation9 + $0x68] sm:$0xff]
    %v571 = vld [vmem:[#allocation9 + $0x70] sm:$0xff]
    %v572 = vld [vmem:[#allocation9 + $0x78] sm:$0xff]
    %v573 = vld [vmem:[%s6] sm:$0x1]
    %v575 = vlaneseq
    %v576 = vshrl.u32 %v575, 7
    %v577 = vsub.s32 0, %v576
    %v578 = vrot.slane %v573, %v577
    %580 = vmatprep.subr.mxu0 0.0
    %581 = vmatpush1.msra.mxu0 %v557
    %582 = vmatprep.subr.mxu0 0.0
    %583 = vmatpush1.msra.mxu0 %v558
    %584 = vmatprep.subr.mxu0 0.0
    %585 = vmatpush1.msra.mxu0 %v559
    %586 = vmatprep.subr.mxu0 0.0
    %587 = vmatpush1.msra.mxu0 %v560
    %588 = vmatprep.subr.mxu0 0.0
    %589 = vmatpush1.msra.mxu0 %v561
    %590 = vmatprep.subr.mxu0 0.0
    %591 = vmatpush1.msra.mxu0 %v562
    %592 = vmatprep.subr.mxu0 0.0
    %593 = vmatpush1.msra.mxu0 %v563
    %594 = vmatprep.subr.mxu0 0.0
    %595 = vmatpush1.msra.mxu0 %v564
    %596 = vmatprep.subr.mxu0 0.0
    %597 = vmatpush1.msra.mxu0 %v565
    %598 = vmatprep.subr.mxu0 0.0
    %599 = vmatpush1.msra.mxu0 %v566
    %600 = vmatprep.subr.mxu0 0.0
    %601 = vmatpush1.msra.mxu0 %v567
    %602 = vmatprep.subr.mxu0 0.0
    %603 = vmatpush1.msra.mxu0 %v568
    %604 = vmatprep.subr.mxu0 0.0
    %605 = vmatpush1.msra.mxu0 %v569
    %606 = vmatprep.subr.mxu0 0.0
    %607 = vmatpush1.msra.mxu0 %v570
    %608 = vmatprep.subr.mxu0 0.0
    %609 = vmatpush1.msra.mxu0 %v571
    %610 = vmatprep.subr.mxu0 0.0
    %611 = vmatpush1.msra.mxu0 %v572
    %612 = vmatprep.subr.mxu0 0.0
    %613 = vmatpush1.msra.mxu0 0.0
    %614 = vmatprep.subr.mxu0 0.0
    %615 = vmatpush1.msra.mxu0 0.0
    %616 = vmatprep.subr.mxu0 0.0
    %617 = vmatpush1.msra.mxu0 0.0
    %618 = vmatprep.subr.mxu0 0.0
    %619 = vmatpush1.msra.mxu0 0.0
    %620 = vmatprep.subr.mxu0 0.0
    %621 = vmatpush1.msra.mxu0 0.0
    %622 = vmatprep.subr.mxu0 0.0
    %623 = vmatpush1.msra.mxu0 0.0
    %624 = vmatprep.subr.mxu0 0.0
    %625 = vmatpush1.msra.mxu0 0.0
    %626 = vmatprep.subr.mxu0 0.0
    %627 = vmatpush1.msra.mxu0 0.0
    %628 = vmatprep.subr.mxu0 0.0
    %629 = vmatpush1.msra.mxu0 0.0
    %630 = vmatprep.subr.mxu0 0.0
    %631 = vmatpush1.msra.mxu0 0.0
    %632 = vmatprep.subr.mxu0 0.0
    %633 = vmatpush1.msra.mxu0 0.0
    %634 = vmatprep.subr.mxu0 0.0
    %635 = vmatpush1.msra.mxu0 0.0
    %636 = vmatprep.subr.mxu0 0.0
    %637 = vmatpush1.msra.mxu0 0.0
    %638 = vmatprep.subr.mxu0 0.0
    %639 = vmatpush1.msra.mxu0 0.0
    %640 = vmatprep.subr.mxu0 0.0
    %641 = vmatpush1.msra.mxu0 0.0
    %642 = vmatprep.subr.mxu0 0.0
    %643 = vmatpush1.msra.mxu0 0.0
    %644 = vmatprep.mubr.f32.mxu0 0.0
    %645 = vmatmul.mubr.f32.gmra.mrb[0].mxu0 %v541
    %v646 = vpop.f32.mrb[0].mxu0
    %v647 = vadd.f32 %v578, %v646
    %v648 = vpop.f32.mrb[0].mxu0
    %649 = vmatprep.mubr.f32.mxu0 0.0
    %650 = vmatmul.mubr.f32.gmra.mrb[0].mxu0 %v542
    %v651 = vpop.f32.mrb[0].mxu0
    %v652 = vadd.f32 %v578, %v651
    %v653 = vpop.f32.mrb[0].mxu0
    %654 = vmatprep.mubr.f32.mxu0 0.0
    %655 = vmatmul.mubr.f32.gmra.mrb[0].mxu0 %v543
    %v656 = vpop.f32.mrb[0].mxu0
    %v657 = vadd.f32 %v578, %v656
    %v658 = vpop.f32.mrb[0].mxu0
    %659 = vmatprep.mubr.f32.mxu0 0.0
    %660 = vmatmul.mubr.f32.gmra.mrb[0].mxu0 %v544
    %v661 = vpop.f32.mrb[0].mxu0
    %v662 = vadd.f32 %v578, %v661
    %v663 = vpop.f32.mrb[0].mxu0
    %664 = vmatprep.mubr.f32.mxu0 0.0
    %665 = vmatmul.mubr.f32.gmra.mrb[0].mxu0 %v545
    %v666 = vpop.f32.mrb[0].mxu0
    %v667 = vadd.f32 %v578, %v666
    %v668 = vpop.f32.mrb[0].mxu0
    %669 = vmatprep.mubr.f32.mxu0 0.0
    %670 = vmatmul.mubr.f32.gmra.mrb[0].mxu0 %v546
    %v671 = vpop.f32.mrb[0].mxu0
    %v672 = vadd.f32 %v578, %v671
    %v673 = vpop.f32.mrb[0].mxu0
    %674 = vmatprep.mubr.f32.mxu0 0.0
    %675 = vmatmul.mubr.f32.gmra.mrb[0].mxu0 %v547
    %v676 = vpop.f32.mrb[0].mxu0
    %v677 = vadd.f32 %v578, %v676
    %v678 = vpop.f32.mrb[0].mxu0
    %679 = vmatprep.mubr.f32.mxu0 0.0
    %680 = vmatmul.mubr.f32.gmra.mrb[0].mxu0 %v548
    %v681 = vpop.f32.mrb[0].mxu0
    %v682 = vadd.f32 %v578, %v681
    %v683 = vpop.f32.mrb[0].mxu0
    %684 = vmatprep.mubr.f32.mxu0 0.0
    %685 = vmatmul.mubr.f32.gmra.mrb[0].mxu0 %v549
    %v686 = vpop.f32.mrb[0].mxu0
    %v687 = vadd.f32 %v578, %v686
    %v688 = vpop.f32.mrb[0].mxu0
    %689 = vmatprep.mubr.f32.mxu0 0.0
    %690 = vmatmul.mubr.f32.gmra.mrb[0].mxu0 %v550
    %v691 = vpop.f32.mrb[0].mxu0
    %v692 = vadd.f32 %v578, %v691
    %v693 = vpop.f32.mrb[0].mxu0
    %694 = vmatprep.mubr.f32.mxu0 0.0
    %695 = vmatmul.mubr.f32.gmra.mrb[0].mxu0 %v551
    %v696 = vpop.f32.mrb[0].mxu0
    %v697 = vadd.f32 %v578, %v696
    %v698 = vpop.f32.mrb[0].mxu0
    %699 = vmatprep.mubr.f32.mxu0 0.0
    %700 = vmatmul.mubr.f32.gmra.mrb[0].mxu0 %v552
    %v701 = vpop.f32.mrb[0].mxu0
    %v702 = vadd.f32 %v578, %v701
    %v703 = vpop.f32.mrb[0].mxu0
    %704 = vmatprep.mubr.f32.mxu0 0.0
    %705 = vmatmul.mubr.f32.gmra.mrb[0].mxu0 %v553
    %v706 = vpop.f32.mrb[0].mxu0
    %v707 = vadd.f32 %v578, %v706
    %v708 = vpop.f32.mrb[0].mxu0
    %709 = vmatprep.mubr.f32.mxu0 0.0
    %710 = vmatmul.mubr.f32.gmra.mrb[0].mxu0 %v554
    %v711 = vpop.f32.mrb[0].mxu0
    %v712 = vadd.f32 %v578, %v711
    %v713 = vpop.f32.mrb[0].mxu0
    %714 = vmatprep.mubr.f32.mxu0 0.0
    %715 = vmatmul.mubr.f32.gmra.mrb[0].mxu0 %v555
    %v716 = vpop.f32.mrb[0].mxu0
    %v717 = vadd.f32 %v578, %v716
    %v718 = vpop.f32.mrb[0].mxu0
    %719 = vmatprep.mubr.f32.mxu0 0.0
    %720 = vmatmul.mubr.f32.gmra.mrb[0].mxu0 %v556
    %v721 = vpop.f32.mrb[0].mxu0
    %v722 = vadd.f32 %v578, %v721
    %v723 = vpop.f32.mrb[0].mxu0
    %724 = vdwg.mxu0
    %v725 = vmax.f32 %v647, 0.0
    %v726 = vmax.f32 %v652, 0.0
    %v727 = vmax.f32 %v657, 0.0
    %v728 = vmax.f32 %v662, 0.0
    %v729 = vmax.f32 %v667, 0.0
    %v730 = vmax.f32 %v672, 0.0
    %v731 = vmax.f32 %v677, 0.0
    %v732 = vmax.f32 %v682, 0.0
    %v733 = vmax.f32 %v687, 0.0
    %v734 = vmax.f32 %v692, 0.0
    %v735 = vmax.f32 %v697, 0.0
    %v736 = vmax.f32 %v702, 0.0
    %v737 = vmax.f32 %v707, 0.0
    %v738 = vmax.f32 %v712, 0.0
    %v739 = vmax.f32 %v717, 0.0
    %v740 = vmax.f32 %v722, 0.0
    %v741 = vld [vmem:[%s7] sm:$0xff]
    %742 = vmatprep.subr.mxu0 0.0
    %743 = vmatpush1.xpose.msra.mxu0 %v725
    %744 = vmatprep.subr.mxu0 0.0
    %745 = vmatpush1.xpose.msra.mxu0 %v726
    %746 = vmatprep.subr.mxu0 0.0
    %747 = vmatpush1.xpose.msra.mxu0 %v727
    %748 = vmatprep.subr.mxu0 0.0
    %749 = vmatpush1.xpose.msra.mxu0 %v728
    %750 = vmatprep.subr.mxu0 0.0
    %751 = vmatpush1.xpose.msra.mxu0 %v729
    %752 = vmatprep.subr.mxu0 0.0
    %753 = vmatpush1.xpose.msra.mxu0 %v730
    %754 = vmatprep.subr.mxu0 0.0
    %755 = vmatpush1.xpose.msra.mxu0 %v731
    %756 = vmatprep.subr.mxu0 0.0
    %757 = vmatpush1.xpose.msra.mxu0 %v732
    %758 = vmatprep.subr.mxu0 0.0
    %759 = vmatpush1.xpose.msra.mxu0 %v733
    %760 = vmatprep.subr.mxu0 0.0
    %761 = vmatpush1.xpose.msra.mxu0 %v734
    %762 = vmatprep.subr.mxu0 0.0
    %763 = vmatpush1.xpose.msra.mxu0 %v735
    %764 = vmatprep.subr.mxu0 0.0
    %765 = vmatpush1.xpose.msra.mxu0 %v736
    %766 = vmatprep.subr.mxu0 0.0
    %767 = vmatpush1.xpose.msra.mxu0 %v737
    %768 = vmatprep.subr.mxu0 0.0
    %769 = vmatpush1.xpose.msra.mxu0 %v738
    %770 = vmatprep.subr.mxu0 0.0
    %771 = vmatpush1.xpose.msra.mxu0 %v739
    %772 = vmatprep.subr.mxu0 0.0
    %773 = vmatpush1.xpose.msra.mxu0 %v740
    %774 = vmatprep.subr.mxu0 0.0
    %775 = vmatpush1.xpose.msra.mxu0 0.0
    %776 = vmatprep.subr.mxu0 0.0
    %777 = vmatpush1.xpose.msra.mxu0 0.0
    %778 = vmatprep.subr.mxu0 0.0
    %779 = vmatpush1.xpose.msra.mxu0 0.0
    %780 = vmatprep.subr.mxu0 0.0
    %781 = vmatpush1.xpose.msra.mxu0 0.0
    %782 = vmatprep.subr.mxu0 0.0
    %783 = vmatpush1.xpose.msra.mxu0 0.0
    %784 = vmatprep.subr.mxu0 0.0
    %785 = vmatpush1.xpose.msra.mxu0 0.0
    %786 = vmatprep.subr.mxu0 0.0
    %787 = vmatpush1.xpose.msra.mxu0 0.0
    %788 = vmatprep.subr.mxu0 0.0
    %789 = vmatpush1.xpose.msra.mxu0 0.0
    %790 = vmatprep.subr.mxu0 0.0
    %791 = vmatpush1.xpose.msra.mxu0 0.0
    %792 = vmatprep.subr.mxu0 0.0
    %793 = vmatpush1.xpose.msra.mxu0 0.0
    %794 = vmatprep.subr.mxu0 0.0
    %795 = vmatpush1.xpose.msra.mxu0 0.0
    %796 = vmatprep.subr.mxu0 0.0
    %797 = vmatpush1.xpose.msra.mxu0 0.0
    %798 = vmatprep.subr.mxu0 0.0
    %799 = vmatpush1.xpose.msra.mxu0 0.0
    %800 = vmatprep.subr.mxu0 0.0
    %801 = vmatpush1.xpose.msra.mxu0 0.0
    %802 = vmatprep.subr.mxu0 0.0
    %803 = vmatpush1.xpose.msra.mxu0 0.0
    %804 = vmatprep.subr.mxu0 0.0
    %805 = vmatpush1.xpose.msra.mxu0 0.0
    %806 = vmatprep.mubr.f32.mxu0 0.0
    %807 = vmatmul.mubr.f32.gmra.mrb[0].mxu0 %v741
    %v808 = vpop.f32.mrb[0].mxu0
    %v809 = vadd.f32 0.0, %v808
    %v810 = vpop.f32.mrb[0].mxu0
    %811 = vdwg.mxu0
    %s812 = sld [smem:[#allocation2]]
    %v813 = vstv %s812
    %v814 = vadd.f32 %v809, %v813
    %815 = vst [vmem:[#allocation11] sm:$0x1] %v814
    // Predicated region
    $region54: #{tpu_custom_call.1} parent=1 // pred_check
      _
    $region55: #{tpu_custom_call.1} parent=1 // pred_check_branch
      %817 = sbr.rel (0) target = $region57
    $region56: #{tpu_custom_call.1} parent=1 // pred_region
      %s819 = ssub.s32 16, 16
      %820 = vsyncadd [#allocation5], %s819
      %s822 = sshll.u32 [#allocation11], 4
      %s823 = int_to_ptr.vmem [resolvable:$true] %s822
      %825 = dma.vmem_to_hbm [thread:$0]  %s823, 16, %s9, [#allocation5]
    $region57: #{tpu_custom_call.1} parent=1 // pred_fallthru
      _
    // Predicated region
    $region58: #{tpu_custom_call.1} parent=1 // pred_check
      _
    $region59: #{tpu_custom_call.1} parent=1 // pred_check_branch
      %827 = sbr.rel (0) target = $region61
    $region60: #{tpu_custom_call.1} parent=1 // pred_region
      %828 = dma.done [#allocation5], 16
    $region61: #{tpu_custom_call.1} parent=1 // pred_fallthru
      _
    %829 = vsyncpa [#allocation4], 1
    %830 = vsyncpa [#allocation7], 1
    %831 = vsyncpa [#allocation10], 1
    %832 = vsyncpa [#allocation5], 1

</llo_original>
